<compile_context>
chip_gen: v6e
topology: v6e:2x2x1
jax: 0.10.0
libtpu: 0.0.40
codegen_flags: <defaults>
</compile_context>

<pallas_src>
import jax
import jax.numpy as jnp
from jax.experimental import pallas as pl
from jax.experimental.pallas import tpu as pltpu


INPUT_DIM = 230
HID1 = 256
HID2 = 128
OUT_DIM = 5
OUT_PAD = 128   # w3 columns padded to 128 lanes for the MXU (result sliced to 5)


# ---------------------------------------------------------------------------
# Kernel
# ---------------------------------------------------------------------------
def _mlp_kernel(x_ref, w1_ref, b1_ref, w2_ref, b2_ref, w3_ref, b3_ref, out_ref):
    # Layer 1: fc1 with bn1 folded into (w1, b1); ReLU. dropout1 = identity (eval).
    x = x_ref[...].astype(jnp.bfloat16)                                        # [tb, 230]
    h1 = jnp.dot(x, w1_ref[...], preferred_element_type=jnp.float32)           # [tb, 256] f32
    h1 = jnp.maximum(h1 + b1_ref[...], 0.0)

    # Layer 2: fc2 with bn2 folded; ReLU. dropout2 = identity (eval).
    h2 = jnp.dot(h1.astype(jnp.bfloat16), w2_ref[...],
                 preferred_element_type=jnp.float32)                           # [tb, 128] f32
    h2 = jnp.maximum(h2 + b2_ref[...], 0.0)

    # Output layer: w3 columns padded to 128 for the MXU; slice to 5 real
    # columns before adding the (unpadded) bias and storing the narrow block.
    out = jnp.dot(h2.astype(jnp.bfloat16), w3_ref[...],
                  preferred_element_type=jnp.float32)                          # [tb, 128] f32
    out_ref[...] = out[:, :OUT_DIM] + b3_ref[...]                              # [tb, 5]


# ---------------------------------------------------------------------------
# Wrapper
# ---------------------------------------------------------------------------
def _round_up(n, m):
    return ((n + m - 1) // m) * m


def _choose_tile_b(B):
    if B <= 128:
        # Single small tile, 8-aligned.
        return max(8, _round_up(B, 8))
    # Tiles are multiples of 128, capped at 1024 rows (amortizes the per-step
    # grid overhead), and small enough that the grid keeps >= 2 steps so the
    # "parallel" batch axis can shard across both v7x TensorCores.
    half = (B + 1) // 2
    return min(1024, _round_up(half, 128))


def deep_qb_variant1_forward(x, fused):
    """x: [B, 230] float32. fused: dict from fold_params()."""
    B = x.shape[0]
    tile_b = _choose_tile_b(B)
    B_pad = _round_up(B, tile_b)
    x_p = x if B_pad == B else jnp.pad(x, ((0, B_pad - B), (0, 0)))

    grid = (B_pad // tile_b,)

    out = pl.pallas_call(
        _mlp_kernel,
        out_shape=jax.ShapeDtypeStruct((B_pad, OUT_DIM), jnp.float32),
        grid=grid,
        in_specs=[
            pl.BlockSpec((tile_b, INPUT_DIM), lambda i: (i, 0)),   # x tile (f32, unpadded K)
            pl.BlockSpec((INPUT_DIM, HID1),   lambda i: (0, 0)),   # w1 (resident across tiles)
            pl.BlockSpec((1, HID1),           lambda i: (0, 0)),   # b1
            pl.BlockSpec((HID1, HID2),        lambda i: (0, 0)),   # w2
            pl.BlockSpec((1, HID2),           lambda i: (0, 0)),   # b2
            pl.BlockSpec((HID2, OUT_PAD),     lambda i: (0, 0)),   # w3 (padded cols, zeros)
            pl.BlockSpec((1, OUT_DIM),        lambda i: (0, 0)),   # b3 (unpadded)
        ],
        out_specs=pl.BlockSpec((tile_b, OUT_DIM), lambda i: (i, 0)),
        compiler_params=pltpu.CompilerParams(
            dimension_semantics=("parallel",)),
    )(x_p, fused["w1"], fused["b1"], fused["w2"], fused["b2"],
      fused["w3"], fused["b3"])

    return out[:B]


# ---------------------------------------------------------------------------
# Parameter construction (synthetic, PyTorch-style init) + BN/bias folding
# ---------------------------------------------------------------------------
def init_raw_params(key, eps=1e-5):
    ks = jax.random.split(key, 14)

    def linear(kw, kb, fan_in, fan_out):
        bound = 1.0 / jnp.sqrt(fan_in)
        w = jax.random.uniform(kw, (fan_in, fan_out), jnp.float32, -bound, bound)  # [in, out]
        b = jax.random.uniform(kb, (fan_out,), jnp.float32, -bound, bound)
        return w, b

    w1, b1 = linear(ks[0], ks[1], INPUT_DIM, HID1)
    w2, b2 = linear(ks[2], ks[3], HID1, HID2)
    w3, b3 = linear(ks[4], ks[5], HID2, OUT_DIM)

    def bn(kg, kb, km, kv, dim):
        gamma = 1.0 + 0.1 * jax.random.normal(kg, (dim,), jnp.float32)
        beta = 0.1 * jax.random.normal(kb, (dim,), jnp.float32)
        mean = 0.1 * jax.random.normal(km, (dim,), jnp.float32)
        var = jnp.abs(1.0 + 0.1 * jax.random.normal(kv, (dim,), jnp.float32))
        return gamma, beta, mean, var

    bn1 = bn(ks[6], ks[7], ks[8], ks[9], HID1)
    bn2 = bn(ks[10], ks[11], ks[12], ks[13], HID2)

    return dict(w1=w1, b1=b1, w2=w2, b2=b2, w3=w3, b3=b3,
                bn1=bn1, bn2=bn2, eps=eps)


def fold_params(raw):
    """Fold eval-mode BN + linear bias into (weight, bias); pad w3 cols; cast weights to bf16."""
    eps = raw["eps"]

    def fold(w, b, bn):
        gamma, beta, mean, var = bn
        scale = gamma / jnp.sqrt(var + eps)          # [out]
        w_f = w * scale[None, :]                     # fold scale into weight columns
        b_f = b * scale + (beta - mean * scale)      # single fused bias
        return w_f, b_f

    w1f, b1f = fold(raw["w1"], raw["b1"], raw["bn1"])
    w2f, b2f = fold(raw["w2"], raw["b2"], raw["bn2"])
    w3f, b3f = raw["w3"], raw["b3"]

    # Pad only w3's output columns to 128 lanes (zeros); bias b3 stays at 5.
    w3p = jnp.zeros((HID2, OUT_PAD), jnp.float32).at[:, :OUT_DIM].set(w3f)

    return dict(
        w1=w1f.astype(jnp.bfloat16),                 # (230, 256)
        b1=b1f.reshape(1, HID1),
        w2=w2f.astype(jnp.bfloat16),                 # (256, 128)
        b2=b2f.reshape(1, HID2),
        w3=w3p.astype(jnp.bfloat16),                 # (128, 128)
        b3=b3f.reshape(1, OUT_DIM),                  # (1, 5)
    )


# ---------------------------------------------------------------------------
# References
# ---------------------------------------------------------------------------
def reference_forward_matched(x, fused):
    """Pure-JAX reference mirroring the kernel's bf16-weight / f32-accumulate numerics."""
    xb = x.astype(jnp.bfloat16).astype(jnp.float32)
    w1 = fused["w1"].astype(jnp.float32)
    w2 = fused["w2"].astype(jnp.float32)
    w3 = fused["w3"].astype(jnp.float32)
    h1 = jnp.maximum(xb @ w1 + fused["b1"], 0.0)
    h1 = h1.astype(jnp.bfloat16).astype(jnp.float32)
    h2 = jnp.maximum(h1 @ w2 + fused["b2"], 0.0)
    h2 = h2.astype(jnp.bfloat16).astype(jnp.float32)
    out = (h2 @ w3)[:, :OUT_DIM] + fused["b3"]
    return out


def reference_forward_f32(x, raw):
    """Unfused full-f32 reference of the original module (eval mode)."""
    eps = raw["eps"]

    def bn_apply(h, bn):
        gamma, beta, mean, var = bn
        return (h - mean) / jnp.sqrt(var + eps) * gamma + beta

    h1 = jnp.maximum(bn_apply(x @ raw["w1"] + raw["b1"], raw["bn1"]), 0.0)
    h2 = jnp.maximum(bn_apply(h1 @ raw["w2"] + raw["b2"], raw["bn2"]), 0.0)
    return h2 @ raw["w3"] + raw["b3"]


# ---------------------------------------------------------------------------
if __name__ == "__main__":
    key = jax.random.PRNGKey(0)
    k_x, k_x2, k_p = jax.random.split(key, 3)

    raw = init_raw_params(k_p)
    fused = fold_params(raw)

    # Small-batch run (single 8-aligned tile).
    B = 8
    x = jax.random.normal(k_x, (B, INPUT_DIM), jnp.float32)
    out = jax.block_until_ready(deep_qb_variant1_forward(x, fused))
    assert out.shape == (B, OUT_DIM), out.shape

    ref_m = reference_forward_matched(x, fused)
    err_m = float(jnp.max(jnp.abs(out - ref_m)))
    assert jnp.allclose(out, ref_m, atol=5e-3, rtol=5e-3), f"matched ref max abs err {err_m}"

    ref_f = reference_forward_f32(x, raw)
    err_f = float(jnp.max(jnp.abs(out - ref_f)))
    assert jnp.allclose(out, ref_f, atol=1e-1, rtol=1e-1), f"f32 ref max abs err {err_f}"

    # Multi-tile run (exercises batch padding + 2-step grid / megacore path).
    B2 = 200
    x2 = jax.random.normal(k_x2, (B2, INPUT_DIM), jnp.float32)
    out2 = jax.block_until_ready(deep_qb_variant1_forward(x2, fused))
    assert out2.shape == (B2, OUT_DIM), out2.shape
    ref2 = reference_forward_matched(x2, fused)
    err2 = float(jnp.max(jnp.abs(out2 - ref2)))
    assert jnp.allclose(out2, ref2, atol=5e-3, rtol=5e-3), f"multi-tile max abs err {err2}"

    print("KERNEL_OK")
</pallas_src>

<mosaic_0001>
module attributes {stable_mosaic.version = 11 : i64} {
  func.func @_mlp_kernel(%arg0: i32, %arg1: memref<8x230xf32, #tpu.memory_space<vmem>>, %arg2: memref<230x256xbf16, #tpu.memory_space<vmem>>, %arg3: memref<1x256xf32, #tpu.memory_space<vmem>>, %arg4: memref<256x128xbf16, #tpu.memory_space<vmem>>, %arg5: memref<1x128xf32, #tpu.memory_space<vmem>>, %arg6: memref<128x128xbf16, #tpu.memory_space<vmem>>, %arg7: memref<1x5xf32, #tpu.memory_space<vmem>>, %arg8: memref<8x5xf32, #tpu.memory_space<vmem>>) attributes {dimension_semantics = [#tpu.dimension_semantics<parallel>], iteration_bounds = array<i64: 1>, scalar_prefetch = 0 : i64, scratch_operands = 0 : i64, tpu.core_type = #tpu.core_type<tc>, window_params = [{transform_indices = @transform_0, window_bounds = array<i64: 8, 230>}, {pipeline_mode = #tpu.pipeline_mode<synchronous>, transform_indices = @transform_1, window_bounds = array<i64: 230, 256>}, {pipeline_mode = #tpu.pipeline_mode<synchronous>, transform_indices = @transform_2, window_bounds = array<i64: 1, 256>}, {pipeline_mode = #tpu.pipeline_mode<synchronous>, transform_indices = @transform_3, window_bounds = array<i64: 256, 128>}, {pipeline_mode = #tpu.pipeline_mode<synchronous>, transform_indices = @transform_4, window_bounds = array<i64: 1, 128>}, {pipeline_mode = #tpu.pipeline_mode<synchronous>, transform_indices = @transform_5, window_bounds = array<i64: 128, 128>}, {pipeline_mode = #tpu.pipeline_mode<synchronous>, transform_indices = @transform_6, window_bounds = array<i64: 1, 5>}, {transform_indices = @transform_7, window_bounds = array<i64: 8, 5>}]} {
    %c0 = arith.constant 0 : index
    %c0_0 = arith.constant 0 : index
    %0 = vector.load %arg1[%c0, %c0_0] : memref<8x230xf32, #tpu.memory_space<vmem>>, vector<8x230xf32>
    %1 = arith.truncf %0 : vector<8x230xf32> to vector<8x230xbf16>
    %c0_1 = arith.constant 0 : index
    %c0_2 = arith.constant 0 : index
    %2 = vector.load %arg2[%c0_1, %c0_2] : memref<230x256xbf16, #tpu.memory_space<vmem>>, vector<230x256xbf16>
    %cst = arith.constant dense<0.000000e+00> : vector<8x256xf32>
    %3 = tpu.matmul %1, %2, %cst {dimension_numbers = #tpu.dot_dimension_numbers<[1], [0], [0], [1], [0, 0, 1, 1], [], []>} : vector<8x230xbf16>, vector<230x256xbf16>, vector<8x256xf32> -> vector<8x256xf32>
    %c0_3 = arith.constant 0 : index
    %c0_4 = arith.constant 0 : index
    %4 = vector.load %arg3[%c0_3, %c0_4] : memref<1x256xf32, #tpu.memory_space<vmem>>, vector<1x256xf32>
    %5 = vector.broadcast %4 : vector<1x256xf32> to vector<8x256xf32>
    %6 = arith.addf %3, %5 : vector<8x256xf32>
    %cst_5 = arith.constant 0.000000e+00 : f32
    %7 = vector.broadcast %cst_5 : f32 to vector<8x256xf32>
    %8 = arith.maximumf %6, %7 : vector<8x256xf32>
    %9 = arith.truncf %8 : vector<8x256xf32> to vector<8x256xbf16>
    %c0_6 = arith.constant 0 : index
    %c0_7 = arith.constant 0 : index
    %10 = vector.load %arg4[%c0_6, %c0_7] : memref<256x128xbf16, #tpu.memory_space<vmem>>, vector<256x128xbf16>
    %cst_8 = arith.constant dense<0.000000e+00> : vector<8x128xf32>
    %11 = tpu.matmul %9, %10, %cst_8 {dimension_numbers = #tpu.dot_dimension_numbers<[1], [0], [0], [1], [0, 0, 1, 1], [], []>} : vector<8x256xbf16>, vector<256x128xbf16>, vector<8x128xf32> -> vector<8x128xf32>
    %c0_9 = arith.constant 0 : index
    %c0_10 = arith.constant 0 : index
    %12 = vector.load %arg5[%c0_9, %c0_10] : memref<1x128xf32, #tpu.memory_space<vmem>>, vector<1x128xf32>
    %13 = vector.broadcast %12 : vector<1x128xf32> to vector<8x128xf32>
    %14 = arith.addf %11, %13 : vector<8x128xf32>
    %cst_11 = arith.constant 0.000000e+00 : f32
    %15 = vector.broadcast %cst_11 : f32 to vector<8x128xf32>
    %16 = arith.maximumf %14, %15 : vector<8x128xf32>
    %17 = arith.truncf %16 : vector<8x128xf32> to vector<8x128xbf16>
    %c0_12 = arith.constant 0 : index
    %c0_13 = arith.constant 0 : index
    %18 = vector.load %arg6[%c0_12, %c0_13] : memref<128x128xbf16, #tpu.memory_space<vmem>>, vector<128x128xbf16>
    %cst_14 = arith.constant dense<0.000000e+00> : vector<8x128xf32>
    %19 = tpu.matmul %17, %18, %cst_14 {dimension_numbers = #tpu.dot_dimension_numbers<[1], [0], [0], [1], [0, 0, 1, 1], [], []>} : vector<8x128xbf16>, vector<128x128xbf16>, vector<8x128xf32> -> vector<8x128xf32>
    %20 = vector.extract_strided_slice %19 {offsets = [0, 0], sizes = [8, 5], strides = [1, 1]} : vector<8x128xf32> to vector<8x5xf32>
    %c0_15 = arith.constant 0 : index
    %c0_16 = arith.constant 0 : index
    %21 = vector.load %arg7[%c0_15, %c0_16] : memref<1x5xf32, #tpu.memory_space<vmem>>, vector<1x5xf32>
    %22 = vector.broadcast %21 : vector<1x5xf32> to vector<8x5xf32>
    %23 = arith.addf %20, %22 : vector<8x5xf32>
    %c0_17 = arith.constant 0 : index
    %c0_18 = arith.constant 0 : index
    %24 = vector.load %arg8[%c0_17, %c0_18] : memref<8x5xf32, #tpu.memory_space<vmem>>, vector<8x5xf32>
    tpu.vector_store %arg8[%c0_17, %c0_18], %23 {strides = array<i32>} : memref<8x5xf32, #tpu.memory_space<vmem>>, vector<8x5xf32>,
    return
  }
  func.func @transform_0(%arg0: i32) -> (i32, i32) {
    %c0_i32 = arith.constant 0 : i32
    %c0_i32_0 = arith.constant 0 : i32
    return %arg0, %c0_i32 : i32, i32
  }
  func.func @transform_1(%arg0: i32) -> (i32, i32) {
    %c0_i32 = arith.constant 0 : i32
    %c0_i32_0 = arith.constant 0 : i32
    %c0_i32_1 = arith.constant 0 : i32
    return %c0_i32, %c0_i32_0 : i32, i32
  }
  func.func @transform_2(%arg0: i32) -> (i32, i32) {
    %c0_i32 = arith.constant 0 : i32
    %c0_i32_0 = arith.constant 0 : i32
    %c0_i32_1 = arith.constant 0 : i32
    return %c0_i32, %c0_i32_0 : i32, i32
  }
  func.func @transform_3(%arg0: i32) -> (i32, i32) {
    %c0_i32 = arith.constant 0 : i32
    %c0_i32_0 = arith.constant 0 : i32
    %c0_i32_1 = arith.constant 0 : i32
    return %c0_i32, %c0_i32_0 : i32, i32
  }
  func.func @transform_4(%arg0: i32) -> (i32, i32) {
    %c0_i32 = arith.constant 0 : i32
    %c0_i32_0 = arith.constant 0 : i32
    %c0_i32_1 = arith.constant 0 : i32
    return %c0_i32, %c0_i32_0 : i32, i32
  }
  func.func @transform_5(%arg0: i32) -> (i32, i32) {
    %c0_i32 = arith.constant 0 : i32
    %c0_i32_0 = arith.constant 0 : i32
    %c0_i32_1 = arith.constant 0 : i32
    return %c0_i32, %c0_i32_0 : i32, i32
  }
  func.func @transform_6(%arg0: i32) -> (i32, i32) {
    %c0_i32 = arith.constant 0 : i32
    %c0_i32_0 = arith.constant 0 : i32
    %c0_i32_1 = arith.constant 0 : i32
    return %c0_i32, %c0_i32_0 : i32, i32
  }
  func.func @transform_7(%arg0: i32) -> (i32, i32) {
    %c0_i32 = arith.constant 0 : i32
    %c0_i32_0 = arith.constant 0 : i32
    return %arg0, %c0_i32 : i32, i32
  }
}

</mosaic_0001>

<llo_original>
// kernel: tpu_custom_call.1
$region0: #{tpu_custom_call.1}
  #allocation0 [shape = 'u32[]', space=smem, size = 0x4, offset = 0x4, fixed_abs, tag = 'smem constant byte address 0x4 - core index']
  #allocation1 [shape = 'u32[144,128]{1,0:T(1,128)}', space=vmem, size = 0x12000, scoped, tag = 'internal scratch']
  %s0 = inlined_call_operand.hbm [shape: f32[8,230], index: 0, kind: input, shape index: {}]
  %s1 = inlined_call_operand.hbm [shape: bf16[230,256], index: 1, kind: input, shape index: {}]
  %s2 = inlined_call_operand.vmem [shape: f32[1,256], index: 2, kind: input, shape index: {}]
  %s3 = inlined_call_operand.hbm [shape: bf16[256,128], index: 3, kind: input, shape index: {}]
  %s4 = inlined_call_operand.vmem [shape: f32[1,128], index: 4, kind: input, shape index: {}]
  %s5 = inlined_call_operand.hbm [shape: bf16[128,128], index: 5, kind: input, shape index: {}]
  %s6 = inlined_call_operand.vmem [shape: f32[1,5], index: 6, kind: input, shape index: {}]
  %s7 = inlined_call_operand.hbm [shape: f32[8,5], index: 7, kind: output, shape index: {}]
  %s8 = sld [smem:[#allocation0]]
  $region54: #{tpu_custom_call.1} parent=0
    _
  %s10 = ssub.s32 1, %s8
  %s11 = scalar_select 0, %s10, %s8
  $region1: #{tpu_custom_call.1} parent=0
    #allocation2 [shape = 'u8[8192]{0}', space=vmem, size = 0x2000, scoped, tag = 'input window, operand 0, single buffered']
    #allocation3 [shape = 's32[1]{0}', space=sflag, size = 0x4, scoped, tag = 'scoped memory for tpu_custom_call.1']
    #allocation4 [shape = 's32[1]{0}', space=sflag, size = 0x4, scoped, tag = 'scoped memory for tpu_custom_call.1']
    #allocation5 [shape = 'u8[118784]{0}', space=vmem, size = 0x1d000, scoped, tag = 'input window, operand 1, single buffered']
    #allocation6 [shape = 's32[1]{0}', space=sflag, size = 0x4, scoped, tag = 'scoped memory for tpu_custom_call.1']
    #allocation7 [shape = 'u8[65536]{0}', space=vmem, size = 0x10000, scoped, tag = 'input window, operand 3, single buffered']
    #allocation8 [shape = 'u8[32768]{0}', space=vmem, size = 0x8000, scoped, tag = 'input window, operand 5, single buffered']
    #allocation9 [shape = 's32[1]{0}', space=sflag, size = 0x4, scoped, tag = 'scoped memory for tpu_custom_call.1']
    #allocation10 [shape = 'u8[4096]{0}', space=vmem, size = 0x1000, scoped, tag = 'output window, operand 0, single buffered']
    %12 = vsyncpa [#allocation3], 0
    %13 = vsyncpa [#allocation6], 0
    %14 = vsyncpa [#allocation9], 0
    %15 = vsyncpa [#allocation4], 0
    // Predicated region
    $region2: #{tpu_custom_call.1} parent=1 // pred_check
      _
    $region3: #{tpu_custom_call.1} parent=1 // pred_check_branch
      %17 = sbr.rel (0) target = $region5
    $region4: #{tpu_custom_call.1} parent=1 // pred_region
      %s19 = ssub.s32 256, 256
      %20 = vsyncadd [#allocation3], %s19
      %s22 = sshll.u32 [#allocation2], 4
      %s23 = int_to_ptr.vmem [resolvable:$true] %s22
      %25 = dma.hbm_to_vmem [thread:$0]  %s0, 256, %s23, [#allocation3]
    $region5: #{tpu_custom_call.1} parent=1 // pred_fallthru
      _
    // Predicated region
    $region6: #{tpu_custom_call.1} parent=1 // pred_check
      _
    $region7: #{tpu_custom_call.1} parent=1 // pred_check_branch
      %27 = sbr.rel (0) target = $region9
    $region8: #{tpu_custom_call.1} parent=1 // pred_region
      %s29 = ssub.s32 3712, 3712
      %30 = vsyncadd [#allocation6], %s29
      %s31 = sshll.u32 [#allocation5], 4
      %s32 = int_to_ptr.vmem [resolvable:$true] %s31
      %37 = dma.hbm_to_vmem [thread:$0]  %s1, 3712, %s32, [#allocation6], 128, 128, 8
    $region9: #{tpu_custom_call.1} parent=1 // pred_fallthru
      _
    // Predicated region
    $region10: #{tpu_custom_call.1} parent=1 // pred_check
      _
    $region11: #{tpu_custom_call.1} parent=1 // pred_check_branch
      %39 = sbr.rel (0) target = $region13
    $region12: #{tpu_custom_call.1} parent=1 // pred_region
      _
    $region13: #{tpu_custom_call.1} parent=1 // pred_fallthru
      _
    // Predicated region
    $region14: #{tpu_custom_call.1} parent=1 // pred_check
      _
    $region15: #{tpu_custom_call.1} parent=1 // pred_check_branch
      %41 = sbr.rel (0) target = $region17
    $region16: #{tpu_custom_call.1} parent=1 // pred_region
      %s43 = ssub.s32 2048, 2048
      %44 = vsyncadd [#allocation6], %s43
      %s45 = sshll.u32 [#allocation7], 4
      %s46 = int_to_ptr.vmem [resolvable:$true] %s45
      %51 = dma.hbm_to_vmem [thread:$0]  %s3, 2048, %s46, [#allocation6], 64, 64, 4
    $region17: #{tpu_custom_call.1} parent=1 // pred_fallthru
      _
    // Predicated region
    $region18: #{tpu_custom_call.1} parent=1 // pred_check
      _
    $region19: #{tpu_custom_call.1} parent=1 // pred_check_branch
      %53 = sbr.rel (0) target = $region21
    $region20: #{tpu_custom_call.1} parent=1 // pred_region
      _
    $region21: #{tpu_custom_call.1} parent=1 // pred_fallthru
      _
    // Predicated region
    $region22: #{tpu_custom_call.1} parent=1 // pred_check
      _
    $region23: #{tpu_custom_call.1} parent=1 // pred_check_branch
      %55 = sbr.rel (0) target = $region25
    $region24: #{tpu_custom_call.1} parent=1 // pred_region
      %s57 = ssub.s32 1024, 1024
      %58 = vsyncadd [#allocation9], %s57
      %s59 = sshll.u32 [#allocation8], 4
      %s60 = int_to_ptr.vmem [resolvable:$true] %s59
      %65 = dma.hbm_to_vmem [thread:$0]  %s5, 1024, %s60, [#allocation9], 64, 64, 4
    $region25: #{tpu_custom_call.1} parent=1 // pred_fallthru
      _
    // Predicated region
    $region26: #{tpu_custom_call.1} parent=1 // pred_check
      _
    $region27: #{tpu_custom_call.1} parent=1 // pred_check_branch
      %67 = sbr.rel (0) target = $region29
    $region28: #{tpu_custom_call.1} parent=1 // pred_region
      _
    $region29: #{tpu_custom_call.1} parent=1 // pred_fallthru
      _
    // Predicated region
    $region30: #{tpu_custom_call.1} parent=1 // pred_check
      _
    $region31: #{tpu_custom_call.1} parent=1 // pred_check_branch
      %69 = sbr.rel (0) target = $region33
    $region32: #{tpu_custom_call.1} parent=1 // pred_region
      %70 = dma.done [#allocation3], 256
    $region33: #{tpu_custom_call.1} parent=1 // pred_fallthru
      _
    // Predicated region
    $region34: #{tpu_custom_call.1} parent=1 // pred_check
      _
    $region35: #{tpu_custom_call.1} parent=1 // pred_check_branch
      %72 = sbr.rel (0) target = $region37
    $region36: #{tpu_custom_call.1} parent=1 // pred_region
      %73 = dma.done [#allocation6], 3712
    $region37: #{tpu_custom_call.1} parent=1 // pred_fallthru
      _
    // Predicated region
    $region38: #{tpu_custom_call.1} parent=1 // pred_check
      _
    $region39: #{tpu_custom_call.1} parent=1 // pred_check_branch
      %75 = sbr.rel (0) target = $region41
    $region40: #{tpu_custom_call.1} parent=1 // pred_region
      %76 = dma.done [#allocation6], 2048
    $region41: #{tpu_custom_call.1} parent=1 // pred_fallthru
      _
    // Predicated region
    $region42: #{tpu_custom_call.1} parent=1 // pred_check
      _
    $region43: #{tpu_custom_call.1} parent=1 // pred_check_branch
      %78 = sbr.rel (0) target = $region45
    $region44: #{tpu_custom_call.1} parent=1 // pred_region
      %79 = dma.done [#allocation9], 1024
    $region45: #{tpu_custom_call.1} parent=1 // pred_fallthru
      _
    %v81 = vld [vmem:[#allocation2] sm:$0xff]
    %v82 = vld [vmem:[#allocation2 + $0x8] sm:$0xff]
    %v83 = vpack.c.bf16 %v81, %v81
    %v84 = vpack.c.bf16 %v82, %v82
    %v85 = vld [vmem:[#allocation5] sm:$0xff]
    %v86 = vld [vmem:[#allocation5 + $0x8] sm:$0xff]
    %v87 = vld [vmem:[#allocation5 + $0x10] sm:$0xff]
    %v88 = vld [vmem:[#allocation5 + $0x18] sm:$0xff]
    %v89 = vld [vmem:[#allocation5 + $0x20] sm:$0xff]
    %v90 = vld [vmem:[#allocation5 + $0x28] sm:$0xff]
    %v91 = vld [vmem:[#allocation5 + $0x30] sm:$0xff]
    %v92 = vld [vmem:[#allocation5 + $0x38] sm:$0xff]
    %v93 = vld [vmem:[#allocation5 + $0x40] sm:$0xff]
    %v94 = vld [vmem:[#allocation5 + $0x48] sm:$0xff]
    %v95 = vld [vmem:[#allocation5 + $0x50] sm:$0xff]
    %v96 = vld [vmem:[#allocation5 + $0x58] sm:$0xff]
    %v97 = vld [vmem:[#allocation5 + $0x60] sm:$0xff]
    %v98 = vld [vmem:[#allocation5 + $0x68] sm:$0xff]
    %v99 = vld [vmem:[#allocation5 + $0x70] sm:$0xff]
    %v100 = vld [vmem:[#allocation5 + $0x78] sm:$0xff]
    %v101 = vld [vmem:[#allocation5 + $0x80] sm:$0xff]
    %v102 = vld [vmem:[#allocation5 + $0x88] sm:$0xff]
    %v103 = vld [vmem:[#allocation5 + $0x90] sm:$0xff]
    %v104 = vld [vmem:[#allocation5 + $0x98] sm:$0xff]
    %v105 = vld [vmem:[#allocation5 + $0xa0] sm:$0xff]
    %v106 = vld [vmem:[#allocation5 + $0xa8] sm:$0xff]
    %v107 = vld [vmem:[#allocation5 + $0xb0] sm:$0xff]
    %v108 = vld [vmem:[#allocation5 + $0xb8] sm:$0xff]
    %v109 = vld [vmem:[#allocation5 + $0xc0] sm:$0xff]
    %v110 = vld [vmem:[#allocation5 + $0xc8] sm:$0xff]
    %v111 = vld [vmem:[#allocation5 + $0xd0] sm:$0xff]
    %v112 = vld [vmem:[#allocation5 + $0xd8] sm:$0xff]
    %v113 = vld [vmem:[#allocation5 + $0xe0] sm:$0x77]
    %v114 = vld [vmem:[%s2] sm:$0x3]
    %v116 = vlaneseq
    %v117 = vshrl.u32 %v116, 7
    %v118 = vsub.s32 0, %v117
    %v119 = vrot.slane %v114, %v118
    %v120 = vlaneseq
    %v121 = vshrl.u32 %v120, 7
    %v122 = vsub.s32 1, %v121
    %v123 = vrot.slane %v114, %v122
    %v155 = vunpack.c.l.b16 %v85
    %v156 = vunpack.c.h.b16 %v85
    %v157 = vunpack.c.l.b16 %v86
    %v158 = vunpack.c.h.b16 %v86
    %v159 = vunpack.c.l.b16 %v87
    %v160 = vunpack.c.h.b16 %v87
    %v161 = vunpack.c.l.b16 %v88
    %v162 = vunpack.c.h.b16 %v88
    %v163 = vunpack.c.l.b16 %v89
    %v164 = vunpack.c.h.b16 %v89
    %v165 = vunpack.c.l.b16 %v90
    %v166 = vunpack.c.h.b16 %v90
    %v167 = vunpack.c.l.b16 %v91
    %v168 = vunpack.c.h.b16 %v91
    %v169 = vunpack.c.l.b16 %v92
    %v170 = vunpack.c.h.b16 %v92
    %v171 = vunpack.c.l.b16 %v93
    %v172 = vunpack.c.h.b16 %v93
    %v173 = vunpack.c.l.b16 %v94
    %v174 = vunpack.c.h.b16 %v94
    %v175 = vunpack.c.l.b16 %v95
    %v176 = vunpack.c.h.b16 %v95
    %v177 = vunpack.c.l.b16 %v96
    %v178 = vunpack.c.h.b16 %v96
    %v179 = vunpack.c.l.b16 %v97
    %v180 = vunpack.c.h.b16 %v97
    %v181 = vunpack.c.l.b16 %v98
    %v182 = vunpack.c.h.b16 %v98
    %v183 = vunpack.c.l.b16 %v99
    %v184 = vunpack.c.h.b16 %v99
    %v185 = vunpack.c.l.b16 %v100
    %v186 = vunpack.c.h.b16 %v100
    %v187 = vunpack.c.l.b16 %v101
    %v188 = vunpack.c.h.b16 %v101
    %v189 = vunpack.c.l.b16 %v102
    %v190 = vunpack.c.h.b16 %v102
    %v191 = vunpack.c.l.b16 %v103
    %v192 = vunpack.c.h.b16 %v103
    %v193 = vunpack.c.l.b16 %v104
    %v194 = vunpack.c.h.b16 %v104
    %v195 = vunpack.c.l.b16 %v105
    %v196 = vunpack.c.h.b16 %v105
    %v197 = vunpack.c.l.b16 %v106
    %v198 = vunpack.c.h.b16 %v106
    %v199 = vunpack.c.l.b16 %v107
    %v200 = vunpack.c.h.b16 %v107
    %v201 = vunpack.c.l.b16 %v108
    %v202 = vunpack.c.h.b16 %v108
    %v203 = vunpack.c.l.b16 %v109
    %v204 = vunpack.c.h.b16 %v109
    %v205 = vunpack.c.l.b16 %v110
    %v206 = vunpack.c.h.b16 %v110
    %v207 = vunpack.c.l.b16 %v111
    %v208 = vunpack.c.h.b16 %v111
    %v209 = vunpack.c.l.b16 %v112
    %v210 = vunpack.c.h.b16 %v112
    %v211 = vunpack.c.l.b16 %v113
    %v212 = vunpack.c.h.b16 %v113
    %v213 = vpack.c.b16 %v157, %v155
    %v214 = vpack.c.b16 %v158, %v156
    %v215 = vpack.c.b16 %v161, %v159
    %v216 = vpack.c.b16 %v162, %v160
    %v217 = vpack.c.b16 %v165, %v163
    %v218 = vpack.c.b16 %v166, %v164
    %v219 = vpack.c.b16 %v169, %v167
    %v220 = vpack.c.b16 %v170, %v168
    %v221 = vpack.c.b16 %v173, %v171
    %v222 = vpack.c.b16 %v174, %v172
    %v223 = vpack.c.b16 %v177, %v175
    %v224 = vpack.c.b16 %v178, %v176
    %v225 = vpack.c.b16 %v181, %v179
    %v226 = vpack.c.b16 %v182, %v180
    %v227 = vpack.c.b16 %v185, %v183
    %v228 = vpack.c.b16 %v186, %v184
    %v229 = vpack.c.b16 %v189, %v187
    %v230 = vpack.c.b16 %v190, %v188
    %v231 = vpack.c.b16 %v193, %v191
    %v232 = vpack.c.b16 %v194, %v192
    %v233 = vpack.c.b16 %v197, %v195
    %v234 = vpack.c.b16 %v198, %v196
    %v235 = vpack.c.b16 %v201, %v199
    %v236 = vpack.c.b16 %v202, %v200
    %v237 = vpack.c.b16 %v205, %v203
    %v238 = vpack.c.b16 %v206, %v204
    %v239 = vpack.c.b16 %v209, %v207
    %v240 = vpack.c.b16 %v210, %v208
    %v241 = vpack.c.b16 %v211, %v211
    %v242 = vpack.c.b16 %v212, %v212
    %vm271 = vcmask 834560
    %v273 = vsel %vm271, %v84, 0
    %vm275 = vcmask 1042432
    %v277 = vsel %vm275, %v241, 0
    %v280 = vsel %vm275, %v242, 0
    %282 = vmatprep.subr.bf16.mxu0 %v228
    %283 = vmatpush1.bf16.msra.mxu0 %v227
    %284 = vmatprep.subr.bf16.mxu0 %v226
    %285 = vmatpush1.bf16.msra.mxu0 %v225
    %286 = vmatprep.subr.bf16.mxu0 %v224
    %287 = vmatpush1.bf16.msra.mxu0 %v223
    %288 = vmatprep.subr.bf16.mxu0 %v222
    %289 = vmatpush1.bf16.msra.mxu0 %v221
    %290 = vmatprep.subr.bf16.mxu0 %v220
    %291 = vmatpush1.bf16.msra.mxu0 %v219
    %292 = vmatprep.subr.bf16.mxu0 %v218
    %293 = vmatpush1.bf16.msra.mxu0 %v217
    %294 = vmatprep.subr.bf16.mxu0 %v216
    %295 = vmatpush1.bf16.msra.mxu0 %v215
    %296 = vmatprep.subr.bf16.mxu0 %v214
    %297 = vmatpush1.bf16.msra.mxu0 %v213
    %298 = vmatprep.subr.bf16.mxu0 0
    %299 = vmatpush2.bf16.msra.mxu0 0
    %300 = vmatprep.subr.bf16.mxu0 %v280
    %301 = vmatpush2.bf16.msra.mxu0 %v277
    %302 = vmatprep.subr.bf16.mxu0 %v240
    %303 = vmatpush2.bf16.msra.mxu0 %v239
    %304 = vmatprep.subr.bf16.mxu0 %v238
    %305 = vmatpush2.bf16.msra.mxu0 %v237
    %306 = vmatprep.subr.bf16.mxu0 %v236
    %307 = vmatpush2.bf16.msra.mxu0 %v235
    %308 = vmatprep.subr.bf16.mxu0 %v234
    %309 = vmatpush2.bf16.msra.mxu0 %v233
    %310 = vmatprep.subr.bf16.mxu0 %v232
    %311 = vmatpush2.bf16.msra.mxu0 %v231
    %312 = vmatprep.subr.bf16.mxu0 %v230
    %313 = vmatpush2.bf16.msra.mxu0 %v229
    %314 = vmatprep.mubr.bf16.mxu0 %v273
    %315 = vmatmul.mubr.bf16.gmra.mxu0 %v83
    %v316 = vpop.f32.mrf.mxu0
    %v317 = vadd.f32 %v119, %v316
    %v318 = vpop.f32.mrf.mxu0
    %v319 = vadd.f32 %v123, %v318
    %v320 = vpop.f32.mrf.mxu0
    %v321 = vpop.f32.mrf.mxu0
    %322 = vdwg.mxu0
    %v323 = vmax.f32 %v317, 0.0
    %v324 = vmax.f32 %v319, 0.0
    %v325 = vpack.c.bf16 %v323, %v323
    %v326 = vpack.c.bf16 %v324, %v324
    %v327 = vld [vmem:[#allocation7] sm:$0xf]
    %v328 = vld [vmem:[#allocation7 + $0x4] sm:$0xf]
    %v329 = vld [vmem:[#allocation7 + $0x8] sm:$0xf]
    %v330 = vld [vmem:[#allocation7 + $0xc] sm:$0xf]
    %v331 = vld [vmem:[#allocation7 + $0x10] sm:$0xf]
    %v332 = vld [vmem:[#allocation7 + $0x14] sm:$0xf]
    %v333 = vld [vmem:[#allocation7 + $0x18] sm:$0xf]
    %v334 = vld [vmem:[#allocation7 + $0x1c] sm:$0xf]
    %v335 = vld [vmem:[#allocation7 + $0x20] sm:$0xf]
    %v336 = vld [vmem:[#allocation7 + $0x24] sm:$0xf]
    %v337 = vld [vmem:[#allocation7 + $0x28] sm:$0xf]
    %v338 = vld [vmem:[#allocation7 + $0x2c] sm:$0xf]
    %v339 = vld [vmem:[#allocation7 + $0x30] sm:$0xf]
    %v340 = vld [vmem:[#allocation7 + $0x34] sm:$0xf]
    %v341 = vld [vmem:[#allocation7 + $0x38] sm:$0xf]
    %v342 = vld [vmem:[#allocation7 + $0x3c] sm:$0xf]
    %v343 = vld [vmem:[#allocation7 + $0x40] sm:$0xf]
    %v344 = vld [vmem:[#allocation7 + $0x44] sm:$0xf]
    %v345 = vld [vmem:[#allocation7 + $0x48] sm:$0xf]
    %v346 = vld [vmem:[#allocation7 + $0x4c] sm:$0xf]
    %v347 = vld [vmem:[#allocation7 + $0x50] sm:$0xf]
    %v348 = vld [vmem:[#allocation7 + $0x54] sm:$0xf]
    %v349 = vld [vmem:[#allocation7 + $0x58] sm:$0xf]
    %v350 = vld [vmem:[#allocation7 + $0x5c] sm:$0xf]
    %v351 = vld [vmem:[#allocation7 + $0x60] sm:$0xf]
    %v352 = vld [vmem:[#allocation7 + $0x64] sm:$0xf]
    %v353 = vld [vmem:[#allocation7 + $0x68] sm:$0xf]
    %v354 = vld [vmem:[#allocation7 + $0x6c] sm:$0xf]
    %v355 = vld [vmem:[#allocation7 + $0x70] sm:$0xf]
    %v356 = vld [vmem:[#allocation7 + $0x74] sm:$0xf]
    %v357 = vld [vmem:[#allocation7 + $0x78] sm:$0xf]
    %v358 = vld [vmem:[#allocation7 + $0x7c] sm:$0xf]
    %v359 = vld [vmem:[%s4] sm:$0x1]
    %v361 = vlaneseq
    %v362 = vshrl.u32 %v361, 7
    %v363 = vsub.s32 0, %v362
    %v364 = vrot.slane %v359, %v363
    %v398 = vunpack.c.l.b16 %v327
    %v399 = vunpack.c.l.b16 %v328
    %v400 = vunpack.c.l.b16 %v329
    %v401 = vunpack.c.l.b16 %v330
    %v402 = vunpack.c.l.b16 %v331
    %v403 = vunpack.c.l.b16 %v332
    %v404 = vunpack.c.l.b16 %v333
    %v405 = vunpack.c.l.b16 %v334
    %v406 = vunpack.c.l.b16 %v335
    %v407 = vunpack.c.l.b16 %v336
    %v408 = vunpack.c.l.b16 %v337
    %v409 = vunpack.c.l.b16 %v338
    %v410 = vunpack.c.l.b16 %v339
    %v411 = vunpack.c.l.b16 %v340
    %v412 = vunpack.c.l.b16 %v341
    %v413 = vunpack.c.l.b16 %v342
    %v414 = vunpack.c.l.b16 %v343
    %v415 = vunpack.c.l.b16 %v344
    %v416 = vunpack.c.l.b16 %v345
    %v417 = vunpack.c.l.b16 %v346
    %v418 = vunpack.c.l.b16 %v347
    %v419 = vunpack.c.l.b16 %v348
    %v420 = vunpack.c.l.b16 %v349
    %v421 = vunpack.c.l.b16 %v350
    %v422 = vunpack.c.l.b16 %v351
    %v423 = vunpack.c.l.b16 %v352
    %v424 = vunpack.c.l.b16 %v353
    %v425 = vunpack.c.l.b16 %v354
    %v426 = vunpack.c.l.b16 %v355
    %v427 = vunpack.c.l.b16 %v356
    %v428 = vunpack.c.l.b16 %v357
    %v429 = vunpack.c.l.b16 %v358
    %v430 = vpack.c.b16 %v399, %v398
    %v431 = vpack.c.b16 %v401, %v400
    %v432 = vpack.c.b16 %v403, %v402
    %v433 = vpack.c.b16 %v405, %v404
    %v434 = vpack.c.b16 %v407, %v406
    %v435 = vpack.c.b16 %v409, %v408
    %v436 = vpack.c.b16 %v411, %v410
    %v437 = vpack.c.b16 %v413, %v412
    %v438 = vpack.c.b16 %v415, %v414
    %v439 = vpack.c.b16 %v417, %v416
    %v440 = vpack.c.b16 %v419, %v418
    %v441 = vpack.c.b16 %v421, %v420
    %v442 = vpack.c.b16 %v423, %v422
    %v443 = vpack.c.b16 %v425, %v424
    %v444 = vpack.c.b16 %v427, %v426
    %v445 = vpack.c.b16 %v429, %v428
    %462 = vmatprep.subr.bf16.mxu0 0
    %463 = vmatpush1.bf16.msra.mxu0 %v437
    %464 = vmatprep.subr.bf16.mxu0 0
    %465 = vmatpush1.bf16.msra.mxu0 %v436
    %466 = vmatprep.subr.bf16.mxu0 0
    %467 = vmatpush1.bf16.msra.mxu0 %v435
    %468 = vmatprep.subr.bf16.mxu0 0
    %469 = vmatpush1.bf16.msra.mxu0 %v434
    %470 = vmatprep.subr.bf16.mxu0 0
    %471 = vmatpush1.bf16.msra.mxu0 %v433
    %472 = vmatprep.subr.bf16.mxu0 0
    %473 = vmatpush1.bf16.msra.mxu0 %v432
    %474 = vmatprep.subr.bf16.mxu0 0
    %475 = vmatpush1.bf16.msra.mxu0 %v431
    %476 = vmatprep.subr.bf16.mxu0 0
    %477 = vmatpush1.bf16.msra.mxu0 %v430
    %478 = vmatprep.subr.bf16.mxu0 0
    %479 = vmatpush2.bf16.msra.mxu0 %v445
    %480 = vmatprep.subr.bf16.mxu0 0
    %481 = vmatpush2.bf16.msra.mxu0 %v444
    %482 = vmatprep.subr.bf16.mxu0 0
    %483 = vmatpush2.bf16.msra.mxu0 %v443
    %484 = vmatprep.subr.bf16.mxu0 0
    %485 = vmatpush2.bf16.msra.mxu0 %v442
    %486 = vmatprep.subr.bf16.mxu0 0
    %487 = vmatpush2.bf16.msra.mxu0 %v441
    %488 = vmatprep.subr.bf16.mxu0 0
    %489 = vmatpush2.bf16.msra.mxu0 %v440
    %490 = vmatprep.subr.bf16.mxu0 0
    %491 = vmatpush2.bf16.msra.mxu0 %v439
    %492 = vmatprep.subr.bf16.mxu0 0
    %493 = vmatpush2.bf16.msra.mxu0 %v438
    %494 = vmatprep.mubr.bf16.mxu0 %v326
    %495 = vmatmul.mubr.bf16.gmra.mxu0 %v325
    %v496 = vpop.f32.mrf.mxu0
    %v497 = vadd.f32 %v364, %v496
    %v498 = vpop.f32.mrf.mxu0
    %v499 = vpop.f32.mrf.mxu0
    %v500 = vpop.f32.mrf.mxu0
    %501 = vdwg.mxu0
    %v502 = vmax.f32 %v497, 0.0
    %v503 = vpack.c.bf16 %v502, %v502
    %v504 = vld [vmem:[#allocation8] sm:$0xf]
    %v505 = vld [vmem:[#allocation8 + $0x4] sm:$0xf]
    %v506 = vld [vmem:[#allocation8 + $0x8] sm:$0xf]
    %v507 = vld [vmem:[#allocation8 + $0xc] sm:$0xf]
    %v508 = vld [vmem:[#allocation8 + $0x10] sm:$0xf]
    %v509 = vld [vmem:[#allocation8 + $0x14] sm:$0xf]
    %v510 = vld [vmem:[#allocation8 + $0x18] sm:$0xf]
    %v511 = vld [vmem:[#allocation8 + $0x1c] sm:$0xf]
    %v512 = vld [vmem:[#allocation8 + $0x20] sm:$0xf]
    %v513 = vld [vmem:[#allocation8 + $0x24] sm:$0xf]
    %v514 = vld [vmem:[#allocation8 + $0x28] sm:$0xf]
    %v515 = vld [vmem:[#allocation8 + $0x2c] sm:$0xf]
    %v516 = vld [vmem:[#allocation8 + $0x30] sm:$0xf]
    %v517 = vld [vmem:[#allocation8 + $0x34] sm:$0xf]
    %v518 = vld [vmem:[#allocation8 + $0x38] sm:$0xf]
    %v519 = vld [vmem:[#allocation8 + $0x3c] sm:$0xf]
    %v536 = vunpack.c.l.b16 %v504
    %v537 = vunpack.c.l.b16 %v505
    %v538 = vunpack.c.l.b16 %v506
    %v539 = vunpack.c.l.b16 %v507
    %v540 = vunpack.c.l.b16 %v508
    %v541 = vunpack.c.l.b16 %v509
    %v542 = vunpack.c.l.b16 %v510
    %v543 = vunpack.c.l.b16 %v511
    %v544 = vunpack.c.l.b16 %v512
    %v545 = vunpack.c.l.b16 %v513
    %v546 = vunpack.c.l.b16 %v514
    %v547 = vunpack.c.l.b16 %v515
    %v548 = vunpack.c.l.b16 %v516
    %v549 = vunpack.c.l.b16 %v517
    %v550 = vunpack.c.l.b16 %v518
    %v551 = vunpack.c.l.b16 %v519
    %v552 = vpack.c.b16 %v537, %v536
    %v553 = vpack.c.b16 %v539, %v538
    %v554 = vpack.c.b16 %v541, %v540
    %v555 = vpack.c.b16 %v543, %v542
    %v556 = vpack.c.b16 %v545, %v544
    %v557 = vpack.c.b16 %v547, %v546
    %v558 = vpack.c.b16 %v549, %v548
    %v559 = vpack.c.b16 %v551, %v550
    %568 = vmatprep.subr.bf16.mxu0 0
    %569 = vmatpush1.bf16.msra.mxu0 %v559
    %570 = vmatprep.subr.bf16.mxu0 0
    %571 = vmatpush1.bf16.msra.mxu0 %v558
    %572 = vmatprep.subr.bf16.mxu0 0
    %573 = vmatpush1.bf16.msra.mxu0 %v557
    %574 = vmatprep.subr.bf16.mxu0 0
    %575 = vmatpush1.bf16.msra.mxu0 %v556
    %576 = vmatprep.subr.bf16.mxu0 0
    %577 = vmatpush1.bf16.msra.mxu0 %v555
    %578 = vmatprep.subr.bf16.mxu0 0
    %579 = vmatpush1.bf16.msra.mxu0 %v554
    %580 = vmatprep.subr.bf16.mxu0 0
    %581 = vmatpush1.bf16.msra.mxu0 %v553
    %582 = vmatprep.subr.bf16.mxu0 0
    %583 = vmatpush1.bf16.msra.mxu0 %v552
    %584 = vmatprep.subr.bf16.mxu0 0
    %585 = vmatpush2.bf16.msra.mxu0 0
    %586 = vmatprep.subr.bf16.mxu0 0
    %587 = vmatpush2.bf16.msra.mxu0 0
    %588 = vmatprep.subr.bf16.mxu0 0
    %589 = vmatpush2.bf16.msra.mxu0 0
    %590 = vmatprep.subr.bf16.mxu0 0
    %591 = vmatpush2.bf16.msra.mxu0 0
    %592 = vmatprep.subr.bf16.mxu0 0
    %593 = vmatpush2.bf16.msra.mxu0 0
    %594 = vmatprep.subr.bf16.mxu0 0
    %595 = vmatpush2.bf16.msra.mxu0 0
    %596 = vmatprep.subr.bf16.mxu0 0
    %597 = vmatpush2.bf16.msra.mxu0 0
    %598 = vmatprep.subr.bf16.mxu0 0
    %599 = vmatpush2.bf16.msra.mxu0 0
    %600 = vmatprep.mubr.bf16.mxu0 0
    %601 = vmatmul.mubr.bf16.gmra.mxu0 %v503
    %v602 = vpop.f32.mrf.mxu0
    %v603 = vadd.f32 0.0, %v602
    %v604 = vpop.f32.mrf.mxu0
    %v605 = vpop.f32.mrf.mxu0
    %v606 = vpop.f32.mrf.mxu0
    %607 = vdwg.mxu0
    %v608 = vld [vmem:[%s6] sm:$0x1]
    %v610 = vlaneseq
    %v611 = vshrl.u32 %v610, 7
    %v612 = vsub.s32 0, %v611
    %v613 = vrot.slane %v608, %v612
    %v615 = vadd.f32 %v603, %v613
    %vm616 = vcmask 39936
    %617 = vst.msk [vmem:[#allocation10] sm:$0xff] %vm616, %v615
    // Predicated region
    $region46: #{tpu_custom_call.1} parent=1 // pred_check
      _
    $region47: #{tpu_custom_call.1} parent=1 // pred_check_branch
      %619 = sbr.rel (0) target = $region49
    $region48: #{tpu_custom_call.1} parent=1 // pred_region
      %s621 = ssub.s32 128, 128
      %622 = vsyncadd [#allocation4], %s621
      %s624 = sshll.u32 [#allocation10], 4
      %s625 = int_to_ptr.vmem [resolvable:$true] %s624
      %627 = dma.vmem_to_hbm [thread:$0]  %s625, 128, %s7, [#allocation4]
    $region49: #{tpu_custom_call.1} parent=1 // pred_fallthru
      _
    // Predicated region
    $region50: #{tpu_custom_call.1} parent=1 // pred_check
      _
    $region51: #{tpu_custom_call.1} parent=1 // pred_check_branch
      %629 = sbr.rel (0) target = $region53
    $region52: #{tpu_custom_call.1} parent=1 // pred_region
      %630 = dma.done [#allocation4], 128
    $region53: #{tpu_custom_call.1} parent=1 // pred_fallthru
      _
    %631 = vsyncpa [#allocation3], 1
    %632 = vsyncpa [#allocation6], 1
    %633 = vsyncpa [#allocation9], 1
    %634 = vsyncpa [#allocation4], 1

</llo_original>
